<compile_context>
chip_gen: v7x
topology: tpu7x:2x2x1
jax: 0.10.0
libtpu: 0.0.40
codegen_flags: <defaults>
</compile_context>

<pallas_src>
import functools

import jax
import jax.numpy as jnp
from jax import lax
from jax.experimental import pallas as pl
from jax.experimental.pallas import tpu as pltpu


def _self_attn_kernel(wt_ref, cw_ref, lab_ref, out_ref, *, k):
    """k batch items per grid step.

    wt_ref  : (k, S, C)   weight, pre-transposed (spatial-major)
    cw_ref  : (k, C, S2)  class_weight
    lab_ref : (k, J, S)   label
    out_ref : (J, k*S2)   lane-dense output slab
    """
    outs = []
    for i in range(k):                                   # k is small & static
        # f[j, c] = sum_s label[j, s] * weight[c, s]      (canonical: last x first)
        f = lax.dot_general(
            lab_ref[i], wt_ref[i],
            dimension_numbers=(((1,), (0,)), ((), ())),
            preferred_element_type=jnp.float32)          # (J, C)
        # o[j, s2] = sum_c f[j, c] * cw[c, s2]             (canonical: last x first)
        o = lax.dot_general(
            f, cw_ref[i],
            dimension_numbers=(((1,), (0,)), ((), ())),
            preferred_element_type=jnp.float32)          # (J, S2)
        outs.append(o)
    res = outs[0] if k == 1 else jnp.concatenate(outs, axis=-1)   # (J, k*S2)
    out_ref[...] = res.astype(out_ref.dtype)


def _items_per_step(B, S2):
    """Smallest divisor k of B whose (J, k*S2) output block is lane-dense."""
    for k in range(1, B + 1):
        if B % k == 0 and (k * S2) % 128 == 0:
            return k
    return B  # can't reach 128 lanes: do the whole (tiny) batch in one step


def _self_attn_batched(weight, class_weight, label):
    """weight [B,C,H,W], class_weight [B,C,H2,W2], label [B,J,H,W] -> [B,J,H2,W2]."""
    B, C, H, W = weight.shape
    _, _, H2, W2 = class_weight.shape
    J = label.shape[1]
    S, S2 = H * W, H2 * W2

    # Canonical MXU orientations (no in-kernel transposes); KB-sized XLA ops.
    w_t = weight.reshape(B, C, S).transpose(0, 2, 1)     # (B, S, C)
    cw = class_weight.reshape(B, C, S2)                  # (B, C, S2)
    lab = label.reshape(B, J, S)                         # (B, J, S)

    k = _items_per_step(B, S2)
    grid = (B // k,)

    itemsize = jnp.dtype(weight.dtype).itemsize
    cost = pl.CostEstimate(
        flops=2 * B * (J * S * C + J * C * S2),
        transcendentals=0,
        bytes_accessed=(w_t.size + cw.size + lab.size + B * J * S2) * itemsize,
    )

    out = pl.pallas_call(
        functools.partial(_self_attn_kernel, k=k),
        out_shape=jax.ShapeDtypeStruct((J, B * S2), weight.dtype),
        grid=grid,
        in_specs=[
            pl.BlockSpec((k, S, C), lambda g: (g, 0, 0)),
            pl.BlockSpec((k, C, S2), lambda g: (g, 0, 0)),
            pl.BlockSpec((k, J, S), lambda g: (g, 0, 0)),
        ],
        out_specs=pl.BlockSpec((J, k * S2), lambda g: (0, g)),
        compiler_params=pltpu.CompilerParams(
            dimension_semantics=("parallel",)),
        cost_estimate=cost,
    )(w_t, cw, lab)

    # (J, B*S2) -> (B, J, S2) -> (B, J, H2, W2)
    out = out.reshape(J, B, S2).transpose(1, 0, 2)
    return out.reshape(B, J, H2, W2)


@jax.jit
def self_attention_forward(weight_codes, weight_features,
                           class_weight_codes, class_weight_features,
                           label_codes, label_features):
    """Pallas equivalent of SelfAttention.forward (single fused jit)."""
    pairs = [(weight_codes, class_weight_codes, label_codes)]
    for i in range(len(weight_features)):
        pairs.append((weight_features[i], class_weight_features[i],
                      label_features[i]))

    # Group identically-shaped pairs so each group is ONE pallas_call.
    groups = {}
    for idx, (w, cw, lab) in enumerate(pairs):
        sig = (w.shape, cw.shape, lab.shape)
        groups.setdefault(sig, []).append(idx)

    results = [None] * len(pairs)
    for idxs in groups.values():
        w_stack = jnp.concatenate([pairs[i][0] for i in idxs], axis=0)
        cw_stack = jnp.concatenate([pairs[i][1] for i in idxs], axis=0)
        lab_stack = jnp.concatenate([pairs[i][2] for i in idxs], axis=0)
        out_stack = _self_attn_batched(w_stack, cw_stack, lab_stack)
        n_per = pairs[idxs[0]][0].shape[0]
        for g, i in enumerate(idxs):
            results[i] = out_stack[g * n_per:(g + 1) * n_per]

    return results[0], results[1:]


# ---- pure-JAX reference reproducing the PyTorch branching exactly ----------
def _ref_pair(weight, class_weight, label):
    n_in, H, W = weight.shape[1:]
    if n_in > H * W:
        f = jnp.einsum('niab,nicd->nabcd', class_weight, weight)
        return jnp.einsum('nabcd,nicd->niab', f, label)
    else:
        f = jnp.einsum('nihw,njhw->nij', weight, label)
        return jnp.einsum('nij,nihw->njhw', f, class_weight)


if __name__ == "__main__":
    key = jax.random.PRNGKey(0)
    ks = jax.random.split(key, 9)

    # codes: n_in=4 <= H*W=64  -> "nij" branch
    weight_codes = jax.random.normal(ks[0], (2, 4, 8, 8), jnp.float32)
    class_weight_codes = jax.random.normal(ks[1], (2, 4, 8, 8), jnp.float32)
    label_codes = jax.random.normal(ks[2], (2, 4, 8, 8), jnp.float32)

    # feature 0: n_in=4 <= 64   -> "nij" branch (same shape as codes -> fused call)
    # feature 1: n_in=20 > 16   -> "nabcd" branch (same result, different assoc.)
    weight_features = [
        jax.random.normal(ks[3], (2, 4, 8, 8), jnp.float32),
        jax.random.normal(ks[4], (2, 20, 4, 4), jnp.float32),
    ]
    class_weight_features = [
        jax.random.normal(ks[5], (2, 4, 8, 8), jnp.float32),
        jax.random.normal(ks[6], (2, 20, 4, 4), jnp.float32),
    ]
    label_features = [
        jax.random.normal(ks[7], (2, 4, 8, 8), jnp.float32),
        jax.random.normal(ks[8], (2, 20, 4, 4), jnp.float32),
    ]

    label_code, features = self_attention_forward(
        weight_codes, weight_features,
        class_weight_codes, class_weight_features,
        label_codes, label_features,
    )
    jax.block_until_ready(label_code)
    for f in features:
        jax.block_until_ready(f)

    # correctness check against the exact PyTorch-style einsum reference
    ref_code = _ref_pair(weight_codes, class_weight_codes, label_codes)
    assert label_code.shape == ref_code.shape
    assert jnp.allclose(label_code, ref_code, rtol=1e-4, atol=1e-4)
    for i in range(len(weight_features)):
        ref_f = _ref_pair(weight_features[i], class_weight_features[i],
                          label_features[i])
        assert features[i].shape == ref_f.shape
        assert jnp.allclose(features[i], ref_f, rtol=1e-4, atol=1e-4)

    print("KERNEL_OK")
</pallas_src>

<mosaic_0001>
module attributes {stable_mosaic.version = 11 : i64} {
  func.func @_self_attn_kernel(%arg0: i32, %arg1: memref<2x64x4xf32, #tpu.memory_space<vmem>>, %arg2: memref<2x4x64xf32, #tpu.memory_space<vmem>>, %arg3: memref<2x4x64xf32, #tpu.memory_space<vmem>>, %arg4: memref<4x128xf32, #tpu.memory_space<vmem>>) attributes {dimension_semantics = [#tpu.dimension_semantics<parallel>], iteration_bounds = array<i64: 2>, scalar_prefetch = 0 : i64, scratch_operands = 0 : i64, tpu.core_type = #tpu.core_type<tc>, window_params = [{transform_indices = @transform_0, window_bounds = array<i64: 2, 64, 4>}, {transform_indices = @transform_1, window_bounds = array<i64: 2, 4, 64>}, {transform_indices = @transform_2, window_bounds = array<i64: 2, 4, 64>}, {transform_indices = @transform_3, window_bounds = array<i64: 4, 128>}]} {
    %c0 = arith.constant 0 : index
    %c0_0 = arith.constant 0 : index
    %c0_1 = arith.constant 0 : index
    %0 = vector.load %arg3[%c0, %c0_0, %c0_1] : memref<2x4x64xf32, #tpu.memory_space<vmem>>, vector<1x4x64xf32>
    %1 = vector.shape_cast %0 : vector<1x4x64xf32> to vector<4x64xf32>
    %c0_2 = arith.constant 0 : index
    %c0_3 = arith.constant 0 : index
    %c0_4 = arith.constant 0 : index
    %2 = vector.load %arg1[%c0_2, %c0_3, %c0_4] : memref<2x64x4xf32, #tpu.memory_space<vmem>>, vector<1x64x4xf32>
    %3 = vector.shape_cast %2 : vector<1x64x4xf32> to vector<64x4xf32>
    %cst = arith.constant dense<0.000000e+00> : vector<4x4xf32>
    %4 = tpu.matmul %1, %3, %cst {dimension_numbers = #tpu.dot_dimension_numbers<[1], [0], [0], [1], [0, 0, 1, 1], [], []>} : vector<4x64xf32>, vector<64x4xf32>, vector<4x4xf32> -> vector<4x4xf32>
    %c0_5 = arith.constant 0 : index
    %c0_6 = arith.constant 0 : index
    %c0_7 = arith.constant 0 : index
    %5 = vector.load %arg2[%c0_5, %c0_6, %c0_7] : memref<2x4x64xf32, #tpu.memory_space<vmem>>, vector<1x4x64xf32>
    %6 = vector.shape_cast %5 : vector<1x4x64xf32> to vector<4x64xf32>
    %cst_8 = arith.constant dense<0.000000e+00> : vector<4x64xf32>
    %7 = tpu.matmul %4, %6, %cst_8 {dimension_numbers = #tpu.dot_dimension_numbers<[1], [0], [0], [1], [0, 0, 1, 1], [], []>} : vector<4x4xf32>, vector<4x64xf32>, vector<4x64xf32> -> vector<4x64xf32>
    %c1 = arith.constant 1 : index
    %c0_9 = arith.constant 0 : index
    %c0_10 = arith.constant 0 : index
    %8 = vector.load %arg3[%c1, %c0_9, %c0_10] : memref<2x4x64xf32, #tpu.memory_space<vmem>>, vector<1x4x64xf32>
    %9 = vector.shape_cast %8 : vector<1x4x64xf32> to vector<4x64xf32>
    %c1_11 = arith.constant 1 : index
    %c0_12 = arith.constant 0 : index
    %c0_13 = arith.constant 0 : index
    %10 = vector.load %arg1[%c1_11, %c0_12, %c0_13] : memref<2x64x4xf32, #tpu.memory_space<vmem>>, vector<1x64x4xf32>
    %11 = vector.shape_cast %10 : vector<1x64x4xf32> to vector<64x4xf32>
    %cst_14 = arith.constant dense<0.000000e+00> : vector<4x4xf32>
    %12 = tpu.matmul %9, %11, %cst_14 {dimension_numbers = #tpu.dot_dimension_numbers<[1], [0], [0], [1], [0, 0, 1, 1], [], []>} : vector<4x64xf32>, vector<64x4xf32>, vector<4x4xf32> -> vector<4x4xf32>
    %c1_15 = arith.constant 1 : index
    %c0_16 = arith.constant 0 : index
    %c0_17 = arith.constant 0 : index
    %13 = vector.load %arg2[%c1_15, %c0_16, %c0_17] : memref<2x4x64xf32, #tpu.memory_space<vmem>>, vector<1x4x64xf32>
    %14 = vector.shape_cast %13 : vector<1x4x64xf32> to vector<4x64xf32>
    %cst_18 = arith.constant dense<0.000000e+00> : vector<4x64xf32>
    %15 = tpu.matmul %12, %14, %cst_18 {dimension_numbers = #tpu.dot_dimension_numbers<[1], [0], [0], [1], [0, 0, 1, 1], [], []>} : vector<4x4xf32>, vector<4x64xf32>, vector<4x64xf32> -> vector<4x64xf32>
    %16 = tpu.concatenate %7, %15 in 1 : vector<4x64xf32>, vector<4x64xf32> -> vector<4x128xf32>
    %c0_19 = arith.constant 0 : index
    %c0_20 = arith.constant 0 : index
    %17 = vector.load %arg4[%c0_19, %c0_20] : memref<4x128xf32, #tpu.memory_space<vmem>>, vector<4x128xf32>
    tpu.vector_store %arg4[%c0_19, %c0_20], %16 {strides = array<i32>} : memref<4x128xf32, #tpu.memory_space<vmem>>, vector<4x128xf32>,
    return
  }
  func.func @transform_0(%arg0: i32) -> (i32, i32, i32) {
    %c0_i32 = arith.constant 0 : i32
    %c0_i32_0 = arith.constant 0 : i32
    %c0_i32_1 = arith.constant 0 : i32
    return %arg0, %c0_i32, %c0_i32_0 : i32, i32, i32
  }
  func.func @transform_1(%arg0: i32) -> (i32, i32, i32) {
    %c0_i32 = arith.constant 0 : i32
    %c0_i32_0 = arith.constant 0 : i32
    %c0_i32_1 = arith.constant 0 : i32
    return %arg0, %c0_i32, %c0_i32_0 : i32, i32, i32
  }
  func.func @transform_2(%arg0: i32) -> (i32, i32, i32) {
    %c0_i32 = arith.constant 0 : i32
    %c0_i32_0 = arith.constant 0 : i32
    %c0_i32_1 = arith.constant 0 : i32
    return %arg0, %c0_i32, %c0_i32_0 : i32, i32, i32
  }
  func.func @transform_3(%arg0: i32) -> (i32, i32) {
    %c0_i32 = arith.constant 0 : i32
    %c0_i32_0 = arith.constant 0 : i32
    return %c0_i32, %arg0 : i32, i32
  }
}

module attributes {stable_mosaic.version = 11 : i64} {
  func.func @_self_attn_kernel(%arg0: i32, %arg1: memref<2x16x20xf32, #tpu.memory_space<vmem>>, %arg2: memref<2x20x16xf32, #tpu.memory_space<vmem>>, %arg3: memref<2x20x16xf32, #tpu.memory_space<vmem>>, %arg4: memref<20x32xf32, #tpu.memory_space<vmem>>) attributes {dimension_semantics = [#tpu.dimension_semantics<parallel>], iteration_bounds = array<i64: 1>, scalar_prefetch = 0 : i64, scratch_operands = 0 : i64, tpu.core_type = #tpu.core_type<tc>, window_params = [{transform_indices = @transform_0, window_bounds = array<i64: 2, 16, 20>}, {transform_indices = @transform_1, window_bounds = array<i64: 2, 20, 16>}, {transform_indices = @transform_2, window_bounds = array<i64: 2, 20, 16>}, {transform_indices = @transform_3, window_bounds = array<i64: 20, 32>}]} {
    %c0 = arith.constant 0 : index
    %c0_0 = arith.constant 0 : index
    %c0_1 = arith.constant 0 : index
    %0 = vector.load %arg3[%c0, %c0_0, %c0_1] : memref<2x20x16xf32, #tpu.memory_space<vmem>>, vector<1x20x16xf32>
    %1 = vector.shape_cast %0 : vector<1x20x16xf32> to vector<20x16xf32>
    %c0_2 = arith.constant 0 : index
    %c0_3 = arith.constant 0 : index
    %c0_4 = arith.constant 0 : index
    %2 = vector.load %arg1[%c0_2, %c0_3, %c0_4] : memref<2x16x20xf32, #tpu.memory_space<vmem>>, vector<1x16x20xf32>
    %3 = vector.shape_cast %2 : vector<1x16x20xf32> to vector<16x20xf32>
    %cst = arith.constant dense<0.000000e+00> : vector<20x20xf32>
    %4 = tpu.matmul %1, %3, %cst {dimension_numbers = #tpu.dot_dimension_numbers<[1], [0], [0], [1], [0, 0, 1, 1], [], []>} : vector<20x16xf32>, vector<16x20xf32>, vector<20x20xf32> -> vector<20x20xf32>
    %c0_5 = arith.constant 0 : index
    %c0_6 = arith.constant 0 : index
    %c0_7 = arith.constant 0 : index
    %5 = vector.load %arg2[%c0_5, %c0_6, %c0_7] : memref<2x20x16xf32, #tpu.memory_space<vmem>>, vector<1x20x16xf32>
    %6 = vector.shape_cast %5 : vector<1x20x16xf32> to vector<20x16xf32>
    %cst_8 = arith.constant dense<0.000000e+00> : vector<20x16xf32>
    %7 = tpu.matmul %4, %6, %cst_8 {dimension_numbers = #tpu.dot_dimension_numbers<[1], [0], [0], [1], [0, 0, 1, 1], [], []>} : vector<20x20xf32>, vector<20x16xf32>, vector<20x16xf32> -> vector<20x16xf32>
    %c1 = arith.constant 1 : index
    %c0_9 = arith.constant 0 : index
    %c0_10 = arith.constant 0 : index
    %8 = vector.load %arg3[%c1, %c0_9, %c0_10] : memref<2x20x16xf32, #tpu.memory_space<vmem>>, vector<1x20x16xf32>
    %9 = vector.shape_cast %8 : vector<1x20x16xf32> to vector<20x16xf32>
    %c1_11 = arith.constant 1 : index
    %c0_12 = arith.constant 0 : index
    %c0_13 = arith.constant 0 : index
    %10 = vector.load %arg1[%c1_11, %c0_12, %c0_13] : memref<2x16x20xf32, #tpu.memory_space<vmem>>, vector<1x16x20xf32>
    %11 = vector.shape_cast %10 : vector<1x16x20xf32> to vector<16x20xf32>
    %cst_14 = arith.constant dense<0.000000e+00> : vector<20x20xf32>
    %12 = tpu.matmul %9, %11, %cst_14 {dimension_numbers = #tpu.dot_dimension_numbers<[1], [0], [0], [1], [0, 0, 1, 1], [], []>} : vector<20x16xf32>, vector<16x20xf32>, vector<20x20xf32> -> vector<20x20xf32>
    %c1_15 = arith.constant 1 : index
    %c0_16 = arith.constant 0 : index
    %c0_17 = arith.constant 0 : index
    %13 = vector.load %arg2[%c1_15, %c0_16, %c0_17] : memref<2x20x16xf32, #tpu.memory_space<vmem>>, vector<1x20x16xf32>
    %14 = vector.shape_cast %13 : vector<1x20x16xf32> to vector<20x16xf32>
    %cst_18 = arith.constant dense<0.000000e+00> : vector<20x16xf32>
    %15 = tpu.matmul %12, %14, %cst_18 {dimension_numbers = #tpu.dot_dimension_numbers<[1], [0], [0], [1], [0, 0, 1, 1], [], []>} : vector<20x20xf32>, vector<20x16xf32>, vector<20x16xf32> -> vector<20x16xf32>
    %16 = tpu.concatenate %7, %15 in 1 : vector<20x16xf32>, vector<20x16xf32> -> vector<20x32xf32>
    %c0_19 = arith.constant 0 : index
    %c0_20 = arith.constant 0 : index
    %17 = vector.load %arg4[%c0_19, %c0_20] : memref<20x32xf32, #tpu.memory_space<vmem>>, vector<20x32xf32>
    tpu.vector_store %arg4[%c0_19, %c0_20], %16 {strides = array<i32>} : memref<20x32xf32, #tpu.memory_space<vmem>>, vector<20x32xf32>,
    return
  }
  func.func @transform_0(%arg0: i32) -> (i32, i32, i32) {
    %c0_i32 = arith.constant 0 : i32
    %c0_i32_0 = arith.constant 0 : i32
    %c0_i32_1 = arith.constant 0 : i32
    return %arg0, %c0_i32, %c0_i32_0 : i32, i32, i32
  }
  func.func @transform_1(%arg0: i32) -> (i32, i32, i32) {
    %c0_i32 = arith.constant 0 : i32
    %c0_i32_0 = arith.constant 0 : i32
    %c0_i32_1 = arith.constant 0 : i32
    return %arg0, %c0_i32, %c0_i32_0 : i32, i32, i32
  }
  func.func @transform_2(%arg0: i32) -> (i32, i32, i32) {
    %c0_i32 = arith.constant 0 : i32
    %c0_i32_0 = arith.constant 0 : i32
    %c0_i32_1 = arith.constant 0 : i32
    return %arg0, %c0_i32, %c0_i32_0 : i32, i32, i32
  }
  func.func @transform_3(%arg0: i32) -> (i32, i32) {
    %c0_i32 = arith.constant 0 : i32
    %c0_i32_0 = arith.constant 0 : i32
    return %c0_i32, %arg0 : i32, i32
  }
}

</mosaic_0001>

<llo_original>
// kernel: self_attention_forward.3
$region0: #{self_attention_forward.3}
  #allocation0 [shape = 'u32[]', space=smem, size = 0x4, offset = 0x4, fixed_abs, tag = 'smem constant byte address 0x4 - core index']
  #allocation1 [shape = 'u32[144,128]{1,0:T(1,128)}', space=vmem, size = 0x12000, scoped, tag = 'internal scratch']
  %s0 = inlined_call_operand.vmem [shape: f32[2,16,20], index: 0, kind: input, shape index: {}]
  %s1 = inlined_call_operand.vmem [shape: f32[2,20,16], index: 1, kind: input, shape index: {}]
  %s2 = inlined_call_operand.vmem [shape: f32[2,20,16], index: 2, kind: input, shape index: {}]
  %s3 = inlined_call_operand.vmem [shape: f32[20,32], index: 3, kind: output, shape index: {}]
  %s4 = sld [smem:[#allocation0]]
  $region22: #{self_attention_forward.3} parent=0
    _
  %s6 = ssub.s32 1, %s4
  %s7 = scalar_select 0, %s6, %s4
  // Predicated region
  $region2: #{self_attention_forward.3} parent=0 // pred_check
    _
  $region3: #{self_attention_forward.3} parent=0 // pred_check_branch
    %9 = sbr.rel (0) target = $region5
  $region4: #{self_attention_forward.3} parent=0 // pred_region
    _
  $region5: #{self_attention_forward.3} parent=0 // pred_fallthru
    _
  // Predicated region
  $region6: #{self_attention_forward.3} parent=0 // pred_check
    _
  $region7: #{self_attention_forward.3} parent=0 // pred_check_branch
    %11 = sbr.rel (0) target = $region9
  $region8: #{self_attention_forward.3} parent=0 // pred_region
    _
  $region9: #{self_attention_forward.3} parent=0 // pred_fallthru
    _
  // Predicated region
  $region10: #{self_attention_forward.3} parent=0 // pred_check
    _
  $region11: #{self_attention_forward.3} parent=0 // pred_check_branch
    %13 = sbr.rel (0) target = $region13
  $region12: #{self_attention_forward.3} parent=0 // pred_region
    _
  $region13: #{self_attention_forward.3} parent=0 // pred_fallthru
    _
  %v14 = vld [vmem:[%s2] sm:$0xff]
  %v15 = vld [vmem:[%s2 + $0x8] sm:$0xff]
  %v16 = vld [vmem:[%s2 + $0x10] sm:$0xf]
  %v17 = vld [vmem:[%s0] sm:$0xff]
  %v18 = vld [vmem:[%s0 + $0x8] sm:$0xff]
  %vm19 = vcmask 130048
  %v21 = vsel %vm19, %v14, 0
  %v24 = vsel %vm19, %v15, 0
  %v27 = vsel %vm19, %v16, 0
  %29 = vmatprep.subr.mxu0 0.0
  %30 = vmatpush1.msra.mxu0 %v17
  %31 = vmatprep.subr.mxu0 0.0
  %32 = vmatpush1.msra.mxu0 %v18
  %33 = vmatprep.subr.mxu0 0.0
  %34 = vmatpush1.msra.mxu0 0.0
  %35 = vmatprep.subr.mxu0 0.0
  %36 = vmatpush1.msra.mxu0 0.0
  %37 = vmatprep.subr.mxu0 0.0
  %38 = vmatpush1.msra.mxu0 0.0
  %39 = vmatprep.subr.mxu0 0.0
  %40 = vmatpush1.msra.mxu0 0.0
  %41 = vmatprep.subr.mxu0 0.0
  %42 = vmatpush1.msra.mxu0 0.0
  %43 = vmatprep.subr.mxu0 0.0
  %44 = vmatpush1.msra.mxu0 0.0
  %45 = vmatprep.subr.mxu0 0.0
  %46 = vmatpush1.msra.mxu0 0.0
  %47 = vmatprep.subr.mxu0 0.0
  %48 = vmatpush1.msra.mxu0 0.0
  %49 = vmatprep.subr.mxu0 0.0
  %50 = vmatpush1.msra.mxu0 0.0
  %51 = vmatprep.subr.mxu0 0.0
  %52 = vmatpush1.msra.mxu0 0.0
  %53 = vmatprep.subr.mxu0 0.0
  %54 = vmatpush1.msra.mxu0 0.0
  %55 = vmatprep.subr.mxu0 0.0
  %56 = vmatpush1.msra.mxu0 0.0
  %57 = vmatprep.subr.mxu0 0.0
  %58 = vmatpush1.msra.mxu0 0.0
  %59 = vmatprep.subr.mxu0 0.0
  %60 = vmatpush1.msra.mxu0 0.0
  %61 = vmatprep.subr.mxu0 0.0
  %62 = vmatpush1.msra.mxu0 0.0
  %63 = vmatprep.subr.mxu0 0.0
  %64 = vmatpush1.msra.mxu0 0.0
  %65 = vmatprep.subr.mxu0 0.0
  %66 = vmatpush1.msra.mxu0 0.0
  %67 = vmatprep.subr.mxu0 0.0
  %68 = vmatpush1.msra.mxu0 0.0
  %69 = vmatprep.subr.mxu0 0.0
  %70 = vmatpush1.msra.mxu0 0.0
  %71 = vmatprep.subr.mxu0 0.0
  %72 = vmatpush1.msra.mxu0 0.0
  %73 = vmatprep.subr.mxu0 0.0
  %74 = vmatpush1.msra.mxu0 0.0
  %75 = vmatprep.subr.mxu0 0.0
  %76 = vmatpush1.msra.mxu0 0.0
  %77 = vmatprep.subr.mxu0 0.0
  %78 = vmatpush1.msra.mxu0 0.0
  %79 = vmatprep.subr.mxu0 0.0
  %80 = vmatpush1.msra.mxu0 0.0
  %81 = vmatprep.subr.mxu0 0.0
  %82 = vmatpush1.msra.mxu0 0.0
  %83 = vmatprep.subr.mxu0 0.0
  %84 = vmatpush1.msra.mxu0 0.0
  %85 = vmatprep.subr.mxu0 0.0
  %86 = vmatpush1.msra.mxu0 0.0
  %87 = vmatprep.subr.mxu0 0.0
  %88 = vmatpush1.msra.mxu0 0.0
  %89 = vmatprep.subr.mxu0 0.0
  %90 = vmatpush1.msra.mxu0 0.0
  %91 = vmatprep.subr.mxu0 0.0
  %92 = vmatpush1.msra.mxu0 0.0
  %93 = vmatprep.mubr.f32.mxu0 0.0
  %94 = vmatmul.mubr.f32.gmra.mrb[0].mxu0 %v21
  %v95 = vpop.f32.mrb[0].mxu0
  %v96 = vadd.f32 0.0, %v95
  %v97 = vpop.f32.mrb[0].mxu0
  %98 = vmatprep.mubr.f32.mxu0 0.0
  %99 = vmatmul.mubr.f32.gmra.mrb[0].mxu0 %v24
  %v100 = vpop.f32.mrb[0].mxu0
  %v101 = vadd.f32 0.0, %v100
  %v102 = vpop.f32.mrb[0].mxu0
  %103 = vmatprep.mubr.f32.mxu0 0.0
  %104 = vmatmul.mubr.f32.gmra.mrb[0].mxu0 %v27
  %v105 = vpop.f32.mrb[0].mxu0
  %v106 = vadd.f32 0.0, %v105
  %v107 = vpop.f32.mrb[0].mxu0
  %108 = vdwg.mxu0
  %v109 = vld [vmem:[%s1] sm:$0xff]
  %v110 = vld [vmem:[%s1 + $0x8] sm:$0xff]
  %v111 = vld [vmem:[%s1 + $0x10] sm:$0xf]
  %vm112 = vcmask 162816
  %v114 = vsel %vm112, %v96, 0
  %v117 = vsel %vm112, %v101, 0
  %v120 = vsel %vm112, %v106, 0
  %vm122 = vcmask 1043456
  %v124 = vsel %vm122, %v111, 0
  %126 = vmatprep.subr.mxu0 0.0
  %127 = vmatpush1.msra.mxu0 %v109
  %128 = vmatprep.subr.mxu0 0.0
  %129 = vmatpush1.msra.mxu0 %v110
  %130 = vmatprep.subr.mxu0 0.0
  %131 = vmatpush1.msra.mxu0 %v124
  %132 = vmatprep.subr.mxu0 0.0
  %133 = vmatpush1.msra.mxu0 0.0
  %134 = vmatprep.subr.mxu0 0.0
  %135 = vmatpush1.msra.mxu0 0.0
  %136 = vmatprep.subr.mxu0 0.0
  %137 = vmatpush1.msra.mxu0 0.0
  %138 = vmatprep.subr.mxu0 0.0
  %139 = vmatpush1.msra.mxu0 0.0
  %140 = vmatprep.subr.mxu0 0.0
  %141 = vmatpush1.msra.mxu0 0.0
  %142 = vmatprep.subr.mxu0 0.0
  %143 = vmatpush1.msra.mxu0 0.0
  %144 = vmatprep.subr.mxu0 0.0
  %145 = vmatpush1.msra.mxu0 0.0
  %146 = vmatprep.subr.mxu0 0.0
  %147 = vmatpush1.msra.mxu0 0.0
  %148 = vmatprep.subr.mxu0 0.0
  %149 = vmatpush1.msra.mxu0 0.0
  %150 = vmatprep.subr.mxu0 0.0
  %151 = vmatpush1.msra.mxu0 0.0
  %152 = vmatprep.subr.mxu0 0.0
  %153 = vmatpush1.msra.mxu0 0.0
  %154 = vmatprep.subr.mxu0 0.0
  %155 = vmatpush1.msra.mxu0 0.0
  %156 = vmatprep.subr.mxu0 0.0
  %157 = vmatpush1.msra.mxu0 0.0
  %158 = vmatprep.subr.mxu0 0.0
  %159 = vmatpush1.msra.mxu0 0.0
  %160 = vmatprep.subr.mxu0 0.0
  %161 = vmatpush1.msra.mxu0 0.0
  %162 = vmatprep.subr.mxu0 0.0
  %163 = vmatpush1.msra.mxu0 0.0
  %164 = vmatprep.subr.mxu0 0.0
  %165 = vmatpush1.msra.mxu0 0.0
  %166 = vmatprep.subr.mxu0 0.0
  %167 = vmatpush1.msra.mxu0 0.0
  %168 = vmatprep.subr.mxu0 0.0
  %169 = vmatpush1.msra.mxu0 0.0
  %170 = vmatprep.subr.mxu0 0.0
  %171 = vmatpush1.msra.mxu0 0.0
  %172 = vmatprep.subr.mxu0 0.0
  %173 = vmatpush1.msra.mxu0 0.0
  %174 = vmatprep.subr.mxu0 0.0
  %175 = vmatpush1.msra.mxu0 0.0
  %176 = vmatprep.subr.mxu0 0.0
  %177 = vmatpush1.msra.mxu0 0.0
  %178 = vmatprep.subr.mxu0 0.0
  %179 = vmatpush1.msra.mxu0 0.0
  %180 = vmatprep.subr.mxu0 0.0
  %181 = vmatpush1.msra.mxu0 0.0
  %182 = vmatprep.subr.mxu0 0.0
  %183 = vmatpush1.msra.mxu0 0.0
  %184 = vmatprep.subr.mxu0 0.0
  %185 = vmatpush1.msra.mxu0 0.0
  %186 = vmatprep.subr.mxu0 0.0
  %187 = vmatpush1.msra.mxu0 0.0
  %188 = vmatprep.subr.mxu0 0.0
  %189 = vmatpush1.msra.mxu0 0.0
  %190 = vmatprep.mubr.f32.mxu0 0.0
  %191 = vmatmul.mubr.f32.gmra.mrb[0].mxu0 %v114
  %v192 = vpop.f32.mrb[0].mxu0
  %v193 = vadd.f32 0.0, %v192
  %v194 = vpop.f32.mrb[0].mxu0
  %195 = vmatprep.mubr.f32.mxu0 0.0
  %196 = vmatmul.mubr.f32.gmra.mrb[0].mxu0 %v117
  %v197 = vpop.f32.mrb[0].mxu0
  %v198 = vadd.f32 0.0, %v197
  %v199 = vpop.f32.mrb[0].mxu0
  %200 = vmatprep.mubr.f32.mxu0 0.0
  %201 = vmatmul.mubr.f32.gmra.mrb[0].mxu0 %v120
  %v202 = vpop.f32.mrb[0].mxu0
  %v203 = vadd.f32 0.0, %v202
  %v204 = vpop.f32.mrb[0].mxu0
  %205 = vdwg.mxu0
  %s206 = scalar_lea.vmem %s2, 24
  %v207 = vld [vmem:[%s206] sm:$0xff]
  %v208 = vld [vmem:[%s206 + $0x8] sm:$0xff]
  %v209 = vld [vmem:[%s206 + $0x10] sm:$0xf]
  %s210 = scalar_lea.vmem %s0, 16
  %v211 = vld [vmem:[%s210] sm:$0xff]
  %v212 = vld [vmem:[%s210 + $0x8] sm:$0xff]
  %v214 = vsel %vm19, %v207, 0
  %v217 = vsel %vm19, %v208, 0
  %v220 = vsel %vm19, %v209, 0
  %222 = vmatprep.subr.mxu0 0.0
  %223 = vmatpush1.msra.mxu0 %v211
  %224 = vmatprep.subr.mxu0 0.0
  %225 = vmatpush1.msra.mxu0 %v212
  %226 = vmatprep.subr.mxu0 0.0
  %227 = vmatpush1.msra.mxu0 0.0
  %228 = vmatprep.subr.mxu0 0.0
  %229 = vmatpush1.msra.mxu0 0.0
  %230 = vmatprep.subr.mxu0 0.0
  %231 = vmatpush1.msra.mxu0 0.0
  %232 = vmatprep.subr.mxu0 0.0
  %233 = vmatpush1.msra.mxu0 0.0
  %234 = vmatprep.subr.mxu0 0.0
  %235 = vmatpush1.msra.mxu0 0.0
  %236 = vmatprep.subr.mxu0 0.0
  %237 = vmatpush1.msra.mxu0 0.0
  %238 = vmatprep.subr.mxu0 0.0
  %239 = vmatpush1.msra.mxu0 0.0
  %240 = vmatprep.subr.mxu0 0.0
  %241 = vmatpush1.msra.mxu0 0.0
  %242 = vmatprep.subr.mxu0 0.0
  %243 = vmatpush1.msra.mxu0 0.0
  %244 = vmatprep.subr.mxu0 0.0
  %245 = vmatpush1.msra.mxu0 0.0
  %246 = vmatprep.subr.mxu0 0.0
  %247 = vmatpush1.msra.mxu0 0.0
  %248 = vmatprep.subr.mxu0 0.0
  %249 = vmatpush1.msra.mxu0 0.0
  %250 = vmatprep.subr.mxu0 0.0
  %251 = vmatpush1.msra.mxu0 0.0
  %252 = vmatprep.subr.mxu0 0.0
  %253 = vmatpush1.msra.mxu0 0.0
  %254 = vmatprep.subr.mxu0 0.0
  %255 = vmatpush1.msra.mxu0 0.0
  %256 = vmatprep.subr.mxu0 0.0
  %257 = vmatpush1.msra.mxu0 0.0
  %258 = vmatprep.subr.mxu0 0.0
  %259 = vmatpush1.msra.mxu0 0.0
  %260 = vmatprep.subr.mxu0 0.0
  %261 = vmatpush1.msra.mxu0 0.0
  %262 = vmatprep.subr.mxu0 0.0
  %263 = vmatpush1.msra.mxu0 0.0
  %264 = vmatprep.subr.mxu0 0.0
  %265 = vmatpush1.msra.mxu0 0.0
  %266 = vmatprep.subr.mxu0 0.0
  %267 = vmatpush1.msra.mxu0 0.0
  %268 = vmatprep.subr.mxu0 0.0
  %269 = vmatpush1.msra.mxu0 0.0
  %270 = vmatprep.subr.mxu0 0.0
  %271 = vmatpush1.msra.mxu0 0.0
  %272 = vmatprep.subr.mxu0 0.0
  %273 = vmatpush1.msra.mxu0 0.0
  %274 = vmatprep.subr.mxu0 0.0
  %275 = vmatpush1.msra.mxu0 0.0
  %276 = vmatprep.subr.mxu0 0.0
  %277 = vmatpush1.msra.mxu0 0.0
  %278 = vmatprep.subr.mxu0 0.0
  %279 = vmatpush1.msra.mxu0 0.0
  %280 = vmatprep.subr.mxu0 0.0
  %281 = vmatpush1.msra.mxu0 0.0
  %282 = vmatprep.subr.mxu0 0.0
  %283 = vmatpush1.msra.mxu0 0.0
  %284 = vmatprep.subr.mxu0 0.0
  %285 = vmatpush1.msra.mxu0 0.0
  %286 = vmatprep.mubr.f32.mxu0 0.0
  %287 = vmatmul.mubr.f32.gmra.mrb[0].mxu0 %v214
  %v288 = vpop.f32.mrb[0].mxu0
  %v289 = vadd.f32 0.0, %v288
  %v290 = vpop.f32.mrb[0].mxu0
  %291 = vmatprep.mubr.f32.mxu0 0.0
  %292 = vmatmul.mubr.f32.gmra.mrb[0].mxu0 %v217
  %v293 = vpop.f32.mrb[0].mxu0
  %v294 = vadd.f32 0.0, %v293
  %v295 = vpop.f32.mrb[0].mxu0
  %296 = vmatprep.mubr.f32.mxu0 0.0
  %297 = vmatmul.mubr.f32.gmra.mrb[0].mxu0 %v220
  %v298 = vpop.f32.mrb[0].mxu0
  %v299 = vadd.f32 0.0, %v298
  %v300 = vpop.f32.mrb[0].mxu0
  %301 = vdwg.mxu0
  %s302 = scalar_lea.vmem %s1, 24
  %v303 = vld [vmem:[%s302] sm:$0xff]
  %v304 = vld [vmem:[%s302 + $0x8] sm:$0xff]
  %v305 = vld [vmem:[%s302 + $0x10] sm:$0xf]
  %v307 = vsel %vm112, %v289, 0
  %v310 = vsel %vm112, %v294, 0
  %v313 = vsel %vm112, %v299, 0
  %v316 = vsel %vm122, %v305, 0
  %318 = vmatprep.subr.mxu0 0.0
  %319 = vmatpush1.msra.mxu0 %v303
  %320 = vmatprep.subr.mxu0 0.0
  %321 = vmatpush1.msra.mxu0 %v304
  %322 = vmatprep.subr.mxu0 0.0
  %323 = vmatpush1.msra.mxu0 %v316
  %324 = vmatprep.subr.mxu0 0.0
  %325 = vmatpush1.msra.mxu0 0.0
  %326 = vmatprep.subr.mxu0 0.0
  %327 = vmatpush1.msra.mxu0 0.0
  %328 = vmatprep.subr.mxu0 0.0
  %329 = vmatpush1.msra.mxu0 0.0
  %330 = vmatprep.subr.mxu0 0.0
  %331 = vmatpush1.msra.mxu0 0.0
  %332 = vmatprep.subr.mxu0 0.0
  %333 = vmatpush1.msra.mxu0 0.0
  %334 = vmatprep.subr.mxu0 0.0
  %335 = vmatpush1.msra.mxu0 0.0
  %336 = vmatprep.subr.mxu0 0.0
  %337 = vmatpush1.msra.mxu0 0.0
  %338 = vmatprep.subr.mxu0 0.0
  %339 = vmatpush1.msra.mxu0 0.0
  %340 = vmatprep.subr.mxu0 0.0
  %341 = vmatpush1.msra.mxu0 0.0
  %342 = vmatprep.subr.mxu0 0.0
  %343 = vmatpush1.msra.mxu0 0.0
  %344 = vmatprep.subr.mxu0 0.0
  %345 = vmatpush1.msra.mxu0 0.0
  %346 = vmatprep.subr.mxu0 0.0
  %347 = vmatpush1.msra.mxu0 0.0
  %348 = vmatprep.subr.mxu0 0.0
  %349 = vmatpush1.msra.mxu0 0.0
  %350 = vmatprep.subr.mxu0 0.0
  %351 = vmatpush1.msra.mxu0 0.0
  %352 = vmatprep.subr.mxu0 0.0
  %353 = vmatpush1.msra.mxu0 0.0
  %354 = vmatprep.subr.mxu0 0.0
  %355 = vmatpush1.msra.mxu0 0.0
  %356 = vmatprep.subr.mxu0 0.0
  %357 = vmatpush1.msra.mxu0 0.0
  %358 = vmatprep.subr.mxu0 0.0
  %359 = vmatpush1.msra.mxu0 0.0
  %360 = vmatprep.subr.mxu0 0.0
  %361 = vmatpush1.msra.mxu0 0.0
  %362 = vmatprep.subr.mxu0 0.0
  %363 = vmatpush1.msra.mxu0 0.0
  %364 = vmatprep.subr.mxu0 0.0
  %365 = vmatpush1.msra.mxu0 0.0
  %366 = vmatprep.subr.mxu0 0.0
  %367 = vmatpush1.msra.mxu0 0.0
  %368 = vmatprep.subr.mxu0 0.0
  %369 = vmatpush1.msra.mxu0 0.0
  %370 = vmatprep.subr.mxu0 0.0
  %371 = vmatpush1.msra.mxu0 0.0
  %372 = vmatprep.subr.mxu0 0.0
  %373 = vmatpush1.msra.mxu0 0.0
  %374 = vmatprep.subr.mxu0 0.0
  %375 = vmatpush1.msra.mxu0 0.0
  %376 = vmatprep.subr.mxu0 0.0
  %377 = vmatpush1.msra.mxu0 0.0
  %378 = vmatprep.subr.mxu0 0.0
  %379 = vmatpush1.msra.mxu0 0.0
  %380 = vmatprep.subr.mxu0 0.0
  %381 = vmatpush1.msra.mxu0 0.0
  %382 = vmatprep.mubr.f32.mxu0 0.0
  %383 = vmatmul.mubr.f32.gmra.mrb[0].mxu0 %v307
  %v384 = vpop.f32.mrb[0].mxu0
  %v385 = vadd.f32 0.0, %v384
  %v386 = vpop.f32.mrb[0].mxu0
  %387 = vmatprep.mubr.f32.mxu0 0.0
  %388 = vmatmul.mubr.f32.gmra.mrb[0].mxu0 %v310
  %v389 = vpop.f32.mrb[0].mxu0
  %v390 = vadd.f32 0.0, %v389
  %v391 = vpop.f32.mrb[0].mxu0
  %392 = vmatprep.mubr.f32.mxu0 0.0
  %393 = vmatmul.mubr.f32.gmra.mrb[0].mxu0 %v313
  %v394 = vpop.f32.mrb[0].mxu0
  %v395 = vadd.f32 0.0, %v394
  %v396 = vpop.f32.mrb[0].mxu0
  %397 = vdwg.mxu0
  %401 = vrot.lane.b32.xlu0 %v385, 16
  %v402 = vpop.permute.xlu0 %401
  %403 = vrot.lane.b32.xlu0 %v390, 16
  %v404 = vpop.permute.xlu0 %403
  %405 = vrot.lane.b32.xlu0 %v395, 16
  %v406 = vpop.permute.xlu0 %405
  %v410 = vsel %vm19, %v193, %v402
  %v411 = vsel %vm19, %v198, %v404
  %v412 = vsel %vm19, %v203, %v406
  %vm413 = vcmask 261120
  %414 = vst.msk [vmem:[%s3] sm:$0xff] %vm413, %v410
  %415 = vst.msk [vmem:[%s3 + $0x8] sm:$0xff] %vm413, %v411
  %vm416 = vcmask 257024
  %417 = vst.msk [vmem:[%s3 + $0x10] sm:$0xf] %vm416, %v412
  // Predicated region
  $region14: #{self_attention_forward.3} parent=0 // pred_check
    _
  $region15: #{self_attention_forward.3} parent=0 // pred_check_branch
    %419 = sbr.rel (0) target = $region17
  $region16: #{self_attention_forward.3} parent=0 // pred_region
    _
  $region17: #{self_attention_forward.3} parent=0 // pred_fallthru
    _
  // Predicated region
  $region18: #{self_attention_forward.3} parent=0 // pred_check
    _
  $region19: #{self_attention_forward.3} parent=0 // pred_check_branch
    %421 = sbr.rel (0) target = $region21
  $region20: #{self_attention_forward.3} parent=0 // pred_region
    _
  $region21: #{self_attention_forward.3} parent=0 // pred_fallthru
    _

// kernel: self_attention_forward.2
$region0: #{self_attention_forward.2}
  #allocation0 [shape = 'u32[]', space=smem, size = 0x4, offset = 0x4, fixed_abs, tag = 'smem constant byte address 0x4 - core index']
  #allocation1 [shape = 'u32[144,128]{1,0:T(1,128)}', space=vmem, size = 0x12000, scoped, tag = 'internal scratch']
  %s0 = inlined_call_operand.vmem [shape: f32[4,64,4], index: 0, kind: input, shape index: {}]
  %s1 = inlined_call_operand.vmem [shape: f32[4,4,64], index: 1, kind: input, shape index: {}]
  %s2 = inlined_call_operand.vmem [shape: f32[4,4,64], index: 2, kind: input, shape index: {}]
  %s3 = inlined_call_operand.vmem [shape: f32[4,256], index: 3, kind: output, shape index: {}]
  %s4 = sld [smem:[#allocation0]]
  $region45: #{self_attention_forward.2} parent=0
    _
  %s6 = ssub.s32 1, %s4
  %s7 = scalar_select 0, %s6, %s4
  loop: start=0, step=1, limit=4
  $region2: #{self_attention_forward.2} parent=0 // loop_pre_header
    _
  $region3: #{self_attention_forward.2} parent=0 // loop_header
    %s9 = sphi 0, %s13
    %p10 = scmp.ge.s32.totalorder %s9, 4
    %s19 = sphi 0, %s21
    %s22 = sphi 0, %s19
    %s23 = sphi 0, %s22
    %s39 = sphi 0, %s23
    %s45 = sphi 0, %s47
    %s48 = sphi 0, %s45
    %s49 = sphi 0, %s48
    %s65 = sphi 0, %s49
    %s71 = sphi 0, %s73
    %s74 = sphi 0, %s71
    %s75 = sphi 0, %s74
    %s91 = sphi 0, %s75
    %s97 = sphi 0, %s99
    %s100 = sphi 0, %s97
    %s101 = sphi 0, %s100
    %s117 = sphi 0, %s101
  $region4: #{self_attention_forward.2} parent=0 // loop_header_branch
    %12 = sbr.rel (%p10) target = $region8
  $region5: #{self_attention_forward.2} parent=0 // loop_body
    %s14 = ssub.s32 %s9, 1
    %s15 = ssub.s32 %s9, 2
    %s16 = sadd.s32 %s9, 1
    %s17 = ssub.s32 %s9, %s16
    %p18 = scmp.eq.s32.totalorder %s17, 0
    %s20 = sadd.s32 %s19, 1
    %s21 = scalar_select %p18, %s19, %s20
    %p24 = pneg %p18
    %p25 = scmp.eq.s32.totalorder %s9, 1
    %p26 = por %p24, %p25
    %p27 = scmp.ne.s32.totalorder %s19, %s22
    %p28 = scmp.eq.s32.totalorder %s9, 0
    %p29 = por %p27, %p28
    %p30 = scmp.ne.s32.totalorder %s19, %s22
    %p31 = scmp.eq.s32.totalorder %s14, 1
    %p32 = por %p30, %p31
    %p33 = scmp.ne.s32.totalorder %s22, %s23
    %p34 = scmp.eq.s32.totalorder %s14, 0
    %p35 = por %p33, %p34
    %p36 = scmp.ne.s32.totalorder %s22, %s23
    %p37 = scmp.eq.s32.totalorder %s15, 1
    %p38 = por %p36, %p37
    %p40 = scmp.ne.s32.totalorder %s23, %s39
    %p41 = scmp.eq.s32.totalorder %s15, 0
    %p42 = por %p40, %p41
    %s43 = ssub.s32 %s9, %s16
    %p44 = scmp.eq.s32.totalorder %s43, 0
    %s46 = sadd.s32 %s45, 1
    %s47 = scalar_select %p44, %s45, %s46
    %p50 = pneg %p44
    %p51 = scmp.eq.s32.totalorder %s9, 1
    %p52 = por %p50, %p51
    %p53 = scmp.ne.s32.totalorder %s45, %s48
    %p54 = scmp.eq.s32.totalorder %s9, 0
    %p55 = por %p53, %p54
    %p56 = scmp.ne.s32.totalorder %s45, %s48
    %p57 = scmp.eq.s32.totalorder %s14, 1
    %p58 = por %p56, %p57
    %p59 = scmp.ne.s32.totalorder %s48, %s49
    %p60 = scmp.eq.s32.totalorder %s14, 0
    %p61 = por %p59, %p60
    %p62 = scmp.ne.s32.totalorder %s48, %s49
    %p63 = scmp.eq.s32.totalorder %s15, 1
    %p64 = por %p62, %p63
    %p66 = scmp.ne.s32.totalorder %s49, %s65
    %p67 = scmp.eq.s32.totalorder %s15, 0
    %p68 = por %p66, %p67
    %s69 = ssub.s32 %s9, %s16
    %p70 = scmp.eq.s32.totalorder %s69, 0
    %s72 = sadd.s32 %s71, 1
    %s73 = scalar_select %p70, %s71, %s72
    %p76 = pneg %p70
    %p77 = scmp.eq.s32.totalorder %s9, 1
    %p78 = por %p76, %p77
    %p79 = scmp.ne.s32.totalorder %s71, %s74
    %p80 = scmp.eq.s32.totalorder %s9, 0
    %p81 = por %p79, %p80
    %p82 = scmp.ne.s32.totalorder %s71, %s74
    %p83 = scmp.eq.s32.totalorder %s14, 1
    %p84 = por %p82, %p83
    %p85 = scmp.ne.s32.totalorder %s74, %s75
    %p86 = scmp.eq.s32.totalorder %s14, 0
    %p87 = por %p85, %p86
    %p88 = scmp.ne.s32.totalorder %s74, %s75
    %p89 = scmp.eq.s32.totalorder %s15, 1
    %p90 = por %p88, %p89
    %p92 = scmp.ne.s32.totalorder %s75, %s91
    %p93 = scmp.eq.s32.totalorder %s15, 0
    %p94 = por %p92, %p93
    %s95 = ssub.s32 %s9, %s16
    %p96 = scmp.eq.s32.totalorder %s95, 0
    %s98 = sadd.s32 %s97, 1
    %s99 = scalar_select %p96, %s97, %s98
    %p102 = pneg %p96
    %p103 = scmp.eq.s32.totalorder %s9, 1
    %p104 = por %p102, %p103
    %p105 = scmp.ne.s32.totalorder %s97, %s100
    %p106 = scmp.eq.s32.totalorder %s9, 0
    %p107 = por %p105, %p106
    %p108 = scmp.ne.s32.totalorder %s97, %s100
    %p109 = scmp.eq.s32.totalorder %s14, 1
    %p110 = por %p108, %p109
    %p111 = scmp.ne.s32.totalorder %s100, %s101
    %p112 = scmp.eq.s32.totalorder %s14, 0
    %p113 = por %p111, %p112
    %p114 = scmp.ne.s32.totalorder %s100, %s101
    %p115 = scmp.eq.s32.totalorder %s15, 1
    %p116 = por %p114, %p115
    %p118 = scmp.ne.s32.totalorder %s101, %s117
    %p119 = scmp.eq.s32.totalorder %s15, 0
    %p120 = por %p118, %p119
    %p121 = scmp.le.s32.totalorder 1, %s9
    %p122 = scmp.lt.s32.totalorder %s9, 3
    %p123 = pnand %p121, %p122
    %p124 = pneg %p123
    // Predicated region
    $region9: #{self_attention_forward.2} parent=5 // pred_check
      _
    $region10: #{self_attention_forward.2} parent=5 // pred_check_branch
      %126 = sbr.rel (%p123) target = $region12
    $region11: #{self_attention_forward.2} parent=5 // pred_region
      %s127 = ssub.s32 %s9, 1
    $region12: #{self_attention_forward.2} parent=5 // pred_fallthru
      _
    %p128 = scmp.lt.s32.totalorder %s9, 2
    // Predicated region
    $region13: #{self_attention_forward.2} parent=5 // pred_check
      %p129 = pneg %p128
    $region14: #{self_attention_forward.2} parent=5 // pred_check_branch
      %131 = sbr.rel (%p129) target = $region16
    $region15: #{self_attention_forward.2} parent=5 // pred_region
      // Predicated region
      $region17: #{self_attention_forward.2} parent=15 // pred_check
        %p132 = pneg %p29
      $region18: #{self_attention_forward.2} parent=15 // pred_check_branch
        %134 = sbr.rel (%p132) target = $region20
      $region19: #{self_attention_forward.2} parent=15 // pred_region
        %s135 = smul.u32 2, %s9
        %p136 = scmp.lt.s32.totalorder %s135, 3
        %s137 = scalar_select %p136, %s135, 3
        %s138 = smul.addr %s137, 8
        %s139 = smul.addr %s138, 8
        %s140 = scalar_lea.vmem %s0, %s139
        %s141 = smul.u32 2, %s9
      $region20: #{self_attention_forward.2} parent=15 // pred_fallthru
        _
      // Predicated region
      $region21: #{self_attention_forward.2} parent=15 // pred_check
        %p142 = pneg %p55
      $region22: #{self_attention_forward.2} parent=15 // pred_check_branch
        %144 = sbr.rel (%p142) target = $region24
      $region23: #{self_attention_forward.2} parent=15 // pred_region
        %s145 = smul.u32 2, %s9
        %p146 = scmp.lt.s32.totalorder %s145, 3
        %s147 = scalar_select %p146, %s145, 3
        %s148 = smul.addr %s147, 4
        %s149 = scalar_lea.vmem %s1, %s148
        %s150 = smul.u32 2, %s9
      $region24: #{self_attention_forward.2} parent=15 // pred_fallthru
        _
      // Predicated region
      $region25: #{self_attention_forward.2} parent=15 // pred_check
        %p151 = pneg %p81
      $region26: #{self_attention_forward.2} parent=15 // pred_check_branch
        %153 = sbr.rel (%p151) target = $region28
      $region27: #{self_attention_forward.2} parent=15 // pred_region
        %s154 = smul.u32 2, %s9
        %p155 = scmp.lt.s32.totalorder %s154, 3
        %s156 = scalar_select %p155, %s154, 3
        %s157 = smul.addr %s156, 4
        %s158 = scalar_lea.vmem %s2, %s157
        %s159 = smul.u32 2, %s9
      $region28: #{self_attention_forward.2} parent=15 // pred_fallthru
        _
    $region16: #{self_attention_forward.2} parent=5 // pred_fallthru
      _
    %p160 = scmp.le.s32.totalorder 1, %s9
    %p161 = scmp.lt.s32.totalorder %s9, 3
    %p162 = pnand %p160, %p161
    %p163 = pneg %p162
    // Predicated region
    $region29: #{self_attention_forward.2} parent=5 // pred_check
      _
    $region30: #{self_attention_forward.2} parent=5 // pred_check_branch
      %165 = sbr.rel (%p162) target = $region32
    $region31: #{self_attention_forward.2} parent=5 // pred_region
      %s166 = ssub.s32 %s9, 1
      %s167 = smul.u32 2, %s14
      %p168 = scmp.lt.s32.totalorder %s167, 3
      %s169 = scalar_select %p168, %s167, 3
      %s170 = smul.addr %s169, 8
      %s171 = smul.addr %s170, 8
      %s172 = scalar_lea.vmem %s0, %s171
      %p173 = pneg %p35
      %p174 = pneg %p32
      %s175 = smul.u32 2, %s14
      %p176 = scmp.lt.s32.totalorder %s175, 3
      %s177 = scalar_select %p176, %s175, 3
      %s178 = smul.addr %s177, 4
      %s179 = scalar_lea.vmem %s1, %s178
      %p180 = pneg %p61
      %p181 = pneg %p58
      %s182 = smul.u32 2, %s14
      %p183 = scmp.lt.s32.totalorder %s182, 3
      %s184 = scalar_select %p183, %s182, 3
      %s185 = smul.addr %s184, 4
      %s186 = scalar_lea.vmem %s2, %s185
      %p187 = pneg %p87
      %p188 = pneg %p84
      %p189 = pneg %p113
      %p190 = pneg %p110
      %p191 = scmp.lt.s32.totalorder %s14, 1
      %s192 = scalar_select %p191, %s14, 1
      %s193 = smul.addr %s192, 4
      %s194 = scalar_lea.vmem %s3, %s193
      %s195 = smul.u32 2, %s14
      %p196 = scmp.lt.s32.totalorder %s195, 3
      %s197 = scalar_select %p196, %s195, 3
      %s198 = smul.addr %s197, 8
      %s199 = smul.addr %s198, 8
      %s200 = scalar_lea.vmem %s0, %s199
      %s201 = smul.u32 2, %s14
      %s202 = smul.u32 2, %s14
      %p203 = scmp.lt.s32.totalorder %s202, 3
      %s204 = scalar_select %p203, %s202, 3
      %s205 = smul.addr %s204, 4
      %s206 = scalar_lea.vmem %s1, %s205
      %s207 = smul.u32 2, %s14
      %s208 = smul.u32 2, %s14
      %p209 = scmp.lt.s32.totalorder %s208, 3
      %s210 = scalar_select %p209, %s208, 3
      %s211 = smul.addr %s210, 4
      %s212 = scalar_lea.vmem %s2, %s211
      %s213 = smul.u32 2, %s14
      %p214 = scmp.lt.s32.totalorder %s14, 1
      %s215 = scalar_select %p214, %s14, 1
      %s216 = smul.addr %s215, 4
      %s217 = scalar_lea.vmem %s3, %s216
      %v218 = vld [vmem:[%s212] sm:$0xf]
      %v219 = vld [vmem:[%s200] sm:$0xff]
      %v220 = vld [vmem:[%s200 + $0x8] sm:$0xff]
      %v221 = vld [vmem:[%s200 + $0x10] sm:$0xff]
      %v222 = vld [vmem:[%s200 + $0x18] sm:$0xff]
      %v223 = vld [vmem:[%s200 + $0x20] sm:$0xff]
      %v224 = vld [vmem:[%s200 + $0x28] sm:$0xff]
      %v225 = vld [vmem:[%s200 + $0x30] sm:$0xff]
      %v226 = vld [vmem:[%s200 + $0x38] sm:$0xff]
      %vm227 = vcmask 523264
      %v229 = vsel %vm227, %v218, 0
      %231 = vmatprep.subr.mxu0 0.0
      %232 = vmatpush1.msra.mxu0 %v219
      %233 = vmatprep.subr.mxu0 0.0
      %234 = vmatpush1.msra.mxu0 %v220
      %235 = vmatprep.subr.mxu0 0.0
      %236 = vmatpush1.msra.mxu0 %v221
      %237 = vmatprep.subr.mxu0 0.0
      %238 = vmatpush1.msra.mxu0 %v222
      %239 = vmatprep.subr.mxu0 0.0
      %240 = vmatpush1.msra.mxu0 %v223
      %241 = vmatprep.subr.mxu0 0.0
      %242 = vmatpush1.msra.mxu0 %v224
      %243 = vmatprep.subr.mxu0 0.0
      %244 = vmatpush1.msra.mxu0 %v225
      %245 = vmatprep.subr.mxu0 0.0
      %246 = vmatpush1.msra.mxu0 %v226
      %247 = vmatprep.subr.mxu0 0.0
      %248 = vmatpush1.msra.mxu0 0.0
      %249 = vmatprep.subr.mxu0 0.0
      %250 = vmatpush1.msra.mxu0 0.0
      %251 = vmatprep.subr.mxu0 0.0
      %252 = vmatpush1.msra.mxu0 0.0
      %253 = vmatprep.subr.mxu0 0.0
      %254 = vmatpush1.msra.mxu0 0.0
      %255 = vmatprep.subr.mxu0 0.0
      %256 = vmatpush1.msra.mxu0 0.0
      %257 = vmatprep.subr.mxu0 0.0
      %258 = vmatpush1.msra.mxu0 0.0
      %259 = vmatprep.subr.mxu0 0.0
      %260 = vmatpush1.msra.mxu0 0.0
      %261 = vmatprep.subr.mxu0 0.0
      %262 = vmatpush1.msra.mxu0 0.0
      %263 = vmatprep.subr.mxu0 0.0
      %264 = vmatpush1.msra.mxu0 0.0
      %265 = vmatprep.subr.mxu0 0.0
      %266 = vmatpush1.msra.mxu0 0.0
      %267 = vmatprep.subr.mxu0 0.0
      %268 = vmatpush1.msra.mxu0 0.0
      %269 = vmatprep.subr.mxu0 0.0
      %270 = vmatpush1.msra.mxu0 0.0
      %271 = vmatprep.subr.mxu0 0.0
      %272 = vmatpush1.msra.mxu0 0.0
      %273 = vmatprep.subr.mxu0 0.0
      %274 = vmatpush1.msra.mxu0 0.0
      %275 = vmatprep.subr.mxu0 0.0
      %276 = vmatpush1.msra.mxu0 0.0
      %277 = vmatprep.subr.mxu0 0.0
      %278 = vmatpush1.msra.mxu0 0.0
      %279 = vmatprep.subr.mxu0 0.0
      %280 = vmatpush1.msra.mxu0 0.0
      %281 = vmatprep.subr.mxu0 0.0
      %282 = vmatpush1.msra.mxu0 0.0
      %283 = vmatprep.subr.mxu0 0.0
      %284 = vmatpush1.msra.mxu0 0.0
      %285 = vmatprep.subr.mxu0 0.0
      %286 = vmatpush1.msra.mxu0 0.0
      %287 = vmatprep.subr.mxu0 0.0
      %288 = vmatpush1.msra.mxu0 0.0
      %289 = vmatprep.subr.mxu0 0.0
      %290 = vmatpush1.msra.mxu0 0.0
      %291 = vmatprep.subr.mxu0 0.0
      %292 = vmatpush1.msra.mxu0 0.0
      %293 = vmatprep.subr.mxu0 0.0
      %294 = vmatpush1.msra.mxu0 0.0
      %295 = vmatprep.mubr.f32.mxu0 0.0
      %296 = vmatmul.mubr.f32.gmra.mrb[0].mxu0 %v229
      %v297 = vpop.f32.mrb[0].mxu0
      %v298 = vadd.f32 0.0, %v297
      %v299 = vpop.f32.mrb[0].mxu0
      %300 = vdwg.mxu0
      %v301 = vld [vmem:[%s206] sm:$0xf]
      %vm302 = vcmask 31744
      %v304 = vsel %vm302, %v298, 0
      %vm306 = vcmask 1043456
      %v308 = vsel %vm306, %v301, 0
      %310 = vmatprep.subr.mxu0 0.0
      %311 = vmatpush1.msra.mxu0 %v308
      %312 = vmatprep.subr.mxu0 0.0
      %313 = vmatpush1.msra.mxu0 0.0
      %314 = vmatprep.subr.mxu0 0.0
      %315 = vmatpush1.msra.mxu0 0.0
      %316 = vmatprep.subr.mxu0 0.0
      %317 = vmatpush1.msra.mxu0 0.0
      %318 = vmatprep.subr.mxu0 0.0
      %319 = vmatpush1.msra.mxu0 0.0
      %320 = vmatprep.subr.mxu0 0.0
      %321 = vmatpush1.msra.mxu0 0.0
      %322 = vmatprep.subr.mxu0 0.0
      %323 = vmatpush1.msra.mxu0 0.0
      %324 = vmatprep.subr.mxu0 0.0
      %325 = vmatpush1.msra.mxu0 0.0
      %326 = vmatprep.subr.mxu0 0.0
      %327 = vmatpush1.msra.mxu0 0.0
      %328 = vmatprep.subr.mxu0 0.0
      %329 = vmatpush1.msra.mxu0 0.0
      %330 = vmatprep.subr.mxu0 0.0
      %331 = vmatpush1.msra.mxu0 0.0
      %332 = vmatprep.subr.mxu0 0.0
      %333 = vmatpush1.msra.mxu0 0.0
      %334 = vmatprep.subr.mxu0 0.0
      %335 = vmatpush1.msra.mxu0 0.0
      %336 = vmatprep.subr.mxu0 0.0
      %337 = vmatpush1.msra.mxu0 0.0
      %338 = vmatprep.subr.mxu0 0.0
      %339 = vmatpush1.msra.mxu0 0.0
      %340 = vmatprep.subr.mxu0 0.0
      %341 = vmatpush1.msra.mxu0 0.0
      %342 = vmatprep.subr.mxu0 0.0
      %343 = vmatpush1.msra.mxu0 0.0
      %344 = vmatprep.subr.mxu0 0.0
      %345 = vmatpush1.msra.mxu0 0.0
      %346 = vmatprep.subr.mxu0 0.0
      %347 = vmatpush1.msra.mxu0 0.0
      %348 = vmatprep.subr.mxu0 0.0
      %349 = vmatpush1.msra.mxu0 0.0
      %350 = vmatprep.subr.mxu0 0.0
      %351 = vmatpush1.msra.mxu0 0.0
      %352 = vmatprep.subr.mxu0 0.0
      %353 = vmatpush1.msra.mxu0 0.0
      %354 = vmatprep.subr.mxu0 0.0
      %355 = vmatpush1.msra.mxu0 0.0
      %356 = vmatprep.subr.mxu0 0.0
      %357 = vmatpush1.msra.mxu0 0.0
      %358 = vmatprep.subr.mxu0 0.0
      %359 = vmatpush1.msra.mxu0 0.0
      %360 = vmatprep.subr.mxu0 0.0
      %361 = vmatpush1.msra.mxu0 0.0
      %362 = vmatprep.subr.mxu0 0.0
      %363 = vmatpush1.msra.mxu0 0.0
      %364 = vmatprep.subr.mxu0 0.0
      %365 = vmatpush1.msra.mxu0 0.0
      %366 = vmatprep.subr.mxu0 0.0
      %367 = vmatpush1.msra.mxu0 0.0
      %368 = vmatprep.subr.mxu0 0.0
      %369 = vmatpush1.msra.mxu0 0.0
      %370 = vmatprep.subr.mxu0 0.0
      %371 = vmatpush1.msra.mxu0 0.0
      %372 = vmatprep.subr.mxu0 0.0
      %373 = vmatpush1.msra.mxu0 0.0
      %374 = vmatprep.mubr.f32.mxu0 0.0
      %375 = vmatmul.mubr.f32.gmra.mrb[0].mxu0 %v304
      %v376 = vpop.f32.mrb[0].mxu0
      %v377 = vadd.f32 0.0, %v376
      %v378 = vpop.f32.mrb[0].mxu0
      %379 = vdwg.mxu0
      %s380 = scalar_lea.vmem %s212, 4
      %v381 = vld [vmem:[%s380] sm:$0xf]
      %s382 = scalar_lea.vmem %s200, 64
      %v383 = vld [vmem:[%s382] sm:$0xff]
      %v384 = vld [vmem:[%s382 + $0x8] sm:$0xff]
      %v385 = vld [vmem:[%s382 + $0x10] sm:$0xff]
      %v386 = vld [vmem:[%s382 + $0x18] sm:$0xff]
      %v387 = vld [vmem:[%s382 + $0x20] sm:$0xff]
      %v388 = vld [vmem:[%s382 + $0x28] sm:$0xff]
      %v389 = vld [vmem:[%s382 + $0x30] sm:$0xff]
      %v390 = vld [vmem:[%s382 + $0x38] sm:$0xff]
      %v392 = vsel %vm227, %v381, 0
      %394 = vmatprep.subr.mxu0 0.0
      %395 = vmatpush1.msra.mxu0 %v383
      %396 = vmatprep.subr.mxu0 0.0
      %397 = vmatpush1.msra.mxu0 %v384
      %398 = vmatprep.subr.mxu0 0.0
      %399 = vmatpush1.msra.mxu0 %v385
      %400 = vmatprep.subr.mxu0 0.0
      %401 = vmatpush1.msra.mxu0 %v386
      %402 = vmatprep.subr.mxu0 0.0
      %403 = vmatpush1.msra.mxu0 %v387
      %404 = vmatprep.subr.mxu0 0.0
      %405 = vmatpush1.msra.mxu0 %v388
      %406 = vmatprep.subr.mxu0 0.0
      %407 = vmatpush1.msra.mxu0 %v389
      %408 = vmatprep.subr.mxu0 0.0
      %409 = vmatpush1.msra.mxu0 %v390
      %410 = vmatprep.subr.mxu0 0.0
      %411 = vmatpush1.msra.mxu0 0.0
      %412 = vmatprep.subr.mxu0 0.0
      %413 = vmatpush1.msra.mxu0 0.0
      %414 = vmatprep.subr.mxu0 0.0
      %415 = vmatpush1.msra.mxu0 0.0
      %416 = vmatprep.subr.mxu0 0.0
      %417 = vmatpush1.msra.mxu0 0.0
      %418 = vmatprep.subr.mxu0 0.0
      %419 = vmatpush1.msra.mxu0 0.0
      %420 = vmatprep.subr.mxu0 0.0
      %421 = vmatpush1.msra.mxu0 0.0
      %422 = vmatprep.subr.mxu0 0.0
      %423 = vmatpush1.msra.mxu0 0.0
      %424 = vmatprep.subr.mxu0 0.0
      %425 = vmatpush1.msra.mxu0 0.0
      %426 = vmatprep.subr.mxu0 0.0
      %427 = vmatpush1.msra.mxu0 0.0
      %428 = vmatprep.subr.mxu0 0.0
      %429 = vmatpush1.msra.mxu0 0.0
      %430 = vmatprep.subr.mxu0 0.0
      %431 = vmatpush1.msra.mxu0 0.0
      %432 = vmatprep.subr.mxu0 0.0
      %433 = vmatpush1.msra.mxu0 0.0
      %434 = vmatprep.subr.mxu0 0.0
      %435 = vmatpush1.msra.mxu0 0.0
      %436 = vmatprep.subr.mxu0 0.0
      %437 = vmatpush1.msra.mxu0 0.0
      %438 = vmatprep.subr.mxu0 0.0
      %439 = vmatpush1.msra.mxu0 0.0
      %440 = vmatprep.subr.mxu0 0.0
      %441 = vmatpush1.msra.mxu0 0.0
      %442 = vmatprep.subr.mxu0 0.0
      %443 = vmatpush1.msra.mxu0 0.0
      %444 = vmatprep.subr.mxu0 0.0
      %445 = vmatpush1.msra.mxu0 0.0
      %446 = vmatprep.subr.mxu0 0.0
      %447 = vmatpush1.msra.mxu0 0.0
      %448 = vmatprep.subr.mxu0 0.0
      %449 = vmatpush1.msra.mxu0 0.0
      %450 = vmatprep.subr.mxu0 0.0
      %451 = vmatpush1.msra.mxu0 0.0
      %452 = vmatprep.subr.mxu0 0.0
      %453 = vmatpush1.msra.mxu0 0.0
      %454 = vmatprep.subr.mxu0 0.0
      %455 = vmatpush1.msra.mxu0 0.0
      %456 = vmatprep.subr.mxu0 0.0
      %457 = vmatpush1.msra.mxu0 0.0
      %458 = vmatprep.mubr.f32.mxu0 0.0
      %459 = vmatmul.mubr.f32.gmra.mrb[0].mxu0 %v392
      %v460 = vpop.f32.mrb[0].mxu0
      %v461 = vadd.f32 0.0, %v460
      %v462 = vpop.f32.mrb[0].mxu0
      %463 = vdwg.mxu0
      %s464 = scalar_lea.vmem %s206, 4
      %v465 = vld [vmem:[%s464] sm:$0xf]
      %v467 = vsel %vm302, %v461, 0
      %v470 = vsel %vm306, %v465, 0
      %472 = vmatprep.subr.mxu0 0.0
      %473 = vmatpush1.msra.mxu0 %v470
      %474 = vmatprep.subr.mxu0 0.0
      %475 = vmatpush1.msra.mxu0 0.0
      %476 = vmatprep.subr.mxu0 0.0
      %477 = vmatpush1.msra.mxu0 0.0
      %478 = vmatprep.subr.mxu0 0.0
      %479 = vmatpush1.msra.mxu0 0.0
      %480 = vmatprep.subr.mxu0 0.0
      %481 = vmatpush1.msra.mxu0 0.0
      %482 = vmatprep.subr.mxu0 0.0
      %483 = vmatpush1.msra.mxu0 0.0
      %484 = vmatprep.subr.mxu0 0.0
      %485 = vmatpush1.msra.mxu0 0.0
      %486 = vmatprep.subr.mxu0 0.0
      %487 = vmatpush1.msra.mxu0 0.0
      %488 = vmatprep.subr.mxu0 0.0
      %489 = vmatpush1.msra.mxu0 0.0
      %490 = vmatprep.subr.mxu0 0.0
      %491 = vmatpush1.msra.mxu0 0.0
      %492 = vmatprep.subr.mxu0 0.0
      %493 = vmatpush1.msra.mxu0 0.0
      %494 = vmatprep.subr.mxu0 0.0
      %495 = vmatpush1.msra.mxu0 0.0
      %496 = vmatprep.subr.mxu0 0.0
      %497 = vmatpush1.msra.mxu0 0.0
      %498 = vmatprep.subr.mxu0 0.0
      %499 = vmatpush1.msra.mxu0 0.0
      %500 = vmatprep.subr.mxu0 0.0
      %501 = vmatpush1.msra.mxu0 0.0
      %502 = vmatprep.subr.mxu0 0.0
      %503 = vmatpush1.msra.mxu0 0.0
      %504 = vmatprep.subr.mxu0 0.0
      %505 = vmatpush1.msra.mxu0 0.0
      %506 = vmatprep.subr.mxu0 0.0
      %507 = vmatpush1.msra.mxu0 0.0
      %508 = vmatprep.subr.mxu0 0.0
      %509 = vmatpush1.msra.mxu0 0.0
      %510 = vmatprep.subr.mxu0 0.0
      %511 = vmatpush1.msra.mxu0 0.0
      %512 = vmatprep.subr.mxu0 0.0
      %513 = vmatpush1.msra.mxu0 0.0
      %514 = vmatprep.subr.mxu0 0.0
      %515 = vmatpush1.msra.mxu0 0.0
      %516 = vmatprep.subr.mxu0 0.0
      %517 = vmatpush1.msra.mxu0 0.0
      %518 = vmatprep.subr.mxu0 0.0
      %519 = vmatpush1.msra.mxu0 0.0
      %520 = vmatprep.subr.mxu0 0.0
      %521 = vmatpush1.msra.mxu0 0.0
      %522 = vmatprep.subr.mxu0 0.0
      %523 = vmatpush1.msra.mxu0 0.0
      %524 = vmatprep.subr.mxu0 0.0
      %525 = vmatpush1.msra.mxu0 0.0
      %526 = vmatprep.subr.mxu0 0.0
      %527 = vmatpush1.msra.mxu0 0.0
      %528 = vmatprep.subr.mxu0 0.0
      %529 = vmatpush1.msra.mxu0 0.0
      %530 = vmatprep.subr.mxu0 0.0
      %531 = vmatpush1.msra.mxu0 0.0
      %532 = vmatprep.subr.mxu0 0.0
      %533 = vmatpush1.msra.mxu0 0.0
      %534 = vmatprep.subr.mxu0 0.0
      %535 = vmatpush1.msra.mxu0 0.0
      %536 = vmatprep.mubr.f32.mxu0 0.0
      %537 = vmatmul.mubr.f32.gmra.mrb[0].mxu0 %v467
      %v538 = vpop.f32.mrb[0].mxu0
      %v539 = vadd.f32 0.0, %v538
      %v540 = vpop.f32.mrb[0].mxu0
      %541 = vdwg.mxu0
      %543 = vrot.lane.b32.xlu0 %v539, 64
      %v544 = vpop.permute.xlu0 %543
      %v546 = vsel %vm227, %v377, %v544
      %547 = vst [vmem:[%s217] sm:$0xf] %v546
      %p548 = scmp.lt.s32.totalorder %s14, 1
      %s549 = scalar_select %p548, %s14, 1
      %s550 = smul.addr %s549, 4
      %s551 = scalar_lea.vmem %s3, %s550
      // Predicated region
      $region33: #{self_attention_forward.2} parent=31 // pred_check
        %p552 = pneg %p110
      $region34: #{self_attention_forward.2} parent=31 // pred_check_branch
        %554 = sbr.rel (%p552) target = $region36
      $region35: #{self_attention_forward.2} parent=31 // pred_region
        _
      $region36: #{self_attention_forward.2} parent=31 // pred_fallthru
        _
    $region32: #{self_attention_forward.2} parent=5 // pred_fallthru
      _
    %p555 = scmp.le.s32.totalorder 2, %s9
    // Predicated region
    $region37: #{self_attention_forward.2} parent=5 // pred_check
      %p556 = pneg %p555
    $region38: #{self_attention_forward.2} parent=5 // pred_check_branch
      %558 = sbr.rel (%p556) target = $region40
    $region39: #{self_attention_forward.2} parent=5 // pred_region
      %s559 = ssub.s32 %s9, 2
      // Predicated region
      $region41: #{self_attention_forward.2} parent=39 // pred_check
        %p560 = pneg %p116
      $region42: #{self_attention_forward.2} parent=39 // pred_check_branch
        %562 = sbr.rel (%p560) target = $region44
      $region43: #{self_attention_forward.2} parent=39 // pred_region
        %p563 = scmp.lt.s32.totalorder %s15, 1
        %s564 = scalar_select %p563, %s15, 1
        %s565 = smul.addr %s564, 4
        %s566 = scalar_lea.vmem %s3, %s565
      $region44: #{self_attention_forward.2} parent=39 // pred_fallthru
        _
    $region40: #{self_attention_forward.2} parent=5 // pred_fallthru
      _
  $region6: #{self_attention_forward.2} parent=0 // loop_footer
    %s13 = sadd.s32 1, %s9
  $region7: #{self_attention_forward.2} parent=0 // loop_footer_branch
    %8 = sbr.rel target = $region3
  $region8: #{self_attention_forward.2} parent=0 // loop_exit
    _

</llo_original>
